<compile_context>
chip_gen: v6e
topology: v6e:2x2x1
jax: 0.10.0
libtpu: 0.0.40
codegen_flags: <defaults>
</compile_context>

<pallas_src>
import jax
import jax.numpy as jnp
import numpy as np
from jax.experimental import pallas as pl
from jax.experimental.pallas import tpu as pltpu

POWERS = (1, 2, 3)
LANES = 128
SUBLANES = 8
_MIN_PAD = LANES * SUBLANES           # pad N to a multiple of 1024 -> dense (8,128) tiles
_DEFAULT_BLOCK_ROWS = 4096            # (4096, 128) f32 tile = 2 MiB input DMA per step
_SMALL_N = 1 << 16                    # below this, plain XLA beats any Pallas launch


def make_features(inputs: jnp.ndarray) -> jnp.ndarray:
    """Mirrors the torch `makefeatures`: (N,) -> (F, N) (it returns features.T)."""
    return jnp.stack([inputs.astype(jnp.float32) ** p for p in POWERS], axis=0)


def _fused_linear_kernel(w_ref, b_ref, x_ref, o_ref):
    # w_ref: (3,) SMEM scalars (Linear weights for powers 1, 2, 3)
    # b_ref: (1,) SMEM scalar  (Linear bias)
    # x_ref/o_ref: (TR, 128) VMEM dense f32 tiles -> full (8,128) vreg occupancy
    x = x_ref[...]
    # Horner: b + x*(w0 + x*(w1 + x*w2)) == w0*x + w1*x^2 + w2*x^3 + b
    acc = x * w_ref[2] + w_ref[1]
    acc = acc * x + w_ref[0]
    o_ref[...] = acc * x + b_ref[0]


def linear_model_forward(inputs: jnp.ndarray, w: jnp.ndarray, b: jnp.ndarray, *,
                         block_rows: int = _DEFAULT_BLOCK_ROWS,
                         force_pallas: bool = False) -> jnp.ndarray:
    """Fused makefeatures + nn.Linear(3, 1): raw (N,) inputs -> (N, 1) output.

    Numerically equivalent to the module's forward on the batch-major feature
    matrix, i.e. makefeatures(inputs).T @ W.T + b, but never materializes the
    (N, 3) feature matrix in HBM.
    """
    n = inputs.shape[0]
    x = inputs.reshape(n).astype(jnp.float32)
    w_flat = jnp.asarray(w, jnp.float32).reshape(len(POWERS))
    b_flat = jnp.asarray(b, jnp.float32).reshape(1)

    if n < _SMALL_N and not force_pallas:
        # Small-N fast path: Pallas launch + pad/reshape is pure overhead here.
        out = ((x * w_flat[2] + w_flat[1]) * x + w_flat[0]) * x + b_flat[0]
        return out.reshape(n, 1)

    # Pad N to a multiple of 8*128 and view it as (rows, 128): dense,
    # lane-major, (8,128)-aligned tiles.  (For N already a multiple of 1024
    # this is a free reshape, no HBM copy.)
    n_pad = _MIN_PAD * pl.cdiv(n, _MIN_PAD)
    if n_pad != n:
        x = jnp.pad(x, (0, n_pad - n))
    rows = n_pad // LANES                      # multiple of 8
    tr = min(block_rows, rows)                 # block rows, also a multiple of 8
    grid = (pl.cdiv(rows, tr),)                # ragged last block handled by Pallas

    out_2d = pl.pallas_call(
        _fused_linear_kernel,
        out_shape=jax.ShapeDtypeStruct((rows, LANES), jnp.float32),
        grid=grid,
        in_specs=[
            pl.BlockSpec(memory_space=pltpu.MemorySpace.SMEM),   # w scalars
            pl.BlockSpec(memory_space=pltpu.MemorySpace.SMEM),   # b scalar
            pl.BlockSpec((tr, LANES), lambda i: (i, 0)),         # dense input tile
        ],
        out_specs=pl.BlockSpec((tr, LANES), lambda i: (i, 0)),   # dense output tile
        compiler_params=pltpu.CompilerParams(
            dimension_semantics=("parallel",),        # v7x: 2 TCs split the row blocks
            vmem_limit_bytes=32 * 1024 * 1024,        # safe on v5e/v6e/v7x
        ),
    )(w_flat, b_flat, x.reshape(rows, LANES))

    # Restore PyTorch's (N, 1) column output; padded tail (= b) is sliced off.
    return out_2d.reshape(n_pad)[:n].reshape(n, 1)


if __name__ == "__main__":
    key = jax.random.PRNGKey(0)
    k_in, k_w, k_b, k_big = jax.random.split(key, 4)

    # Deterministic parameter init (PyTorch Linear default: U(-1/sqrt(F), 1/sqrt(F)))
    in_features = len(POWERS)
    bound = 1.0 / np.sqrt(in_features)
    w = jax.random.uniform(k_w, (1, in_features), jnp.float32, -bound, bound)
    b = jax.random.uniform(k_b, (1,), jnp.float32, -bound, bound)

    # --- Small shape consistent with the module: 8 samples -> (8, 3) features ---
    inputs = jax.random.uniform(k_in, (8,), jnp.float32, -1.0, 1.0)
    feats_nf = make_features(inputs).T                      # (8, 3) batch-major features
    ref = feats_nf @ w.T + b                                # module forward reference

    out = jax.block_until_ready(linear_model_forward(inputs, w, b, force_pallas=True))
    assert out.shape == (8, 1)
    np.testing.assert_allclose(np.asarray(out), np.asarray(ref), rtol=1e-5, atol=1e-5)

    # Auto-dispatch (XLA fast path for tiny N) must agree too.
    out_fast = jax.block_until_ready(linear_model_forward(inputs, w, b))
    np.testing.assert_allclose(np.asarray(out_fast), np.asarray(ref), rtol=1e-5, atol=1e-5)

    # --- Larger N: exercises multi-step grid + big dense (4096,128) tiles ---
    n_big = 1 << 21                                         # 2M samples -> 4 grid steps
    inputs_big = jax.random.uniform(k_big, (n_big,), jnp.float32, -1.0, 1.0)
    out_big = jax.block_until_ready(linear_model_forward(inputs_big, w, b))
    xb = inputs_big
    ref_big = (((xb * w[0, 2] + w[0, 1]) * xb + w[0, 0]) * xb + b[0]).reshape(n_big, 1)
    np.testing.assert_allclose(np.asarray(out_big), np.asarray(ref_big),
                               rtol=1e-5, atol=1e-5)

    print("KERNEL_OK")
</pallas_src>

<mosaic_0001>
module attributes {stable_mosaic.version = 11 : i64} {
  func.func @_fused_linear_kernel(%arg0: i32, %arg1: memref<3xf32, #tpu.memory_space<smem>>, %arg2: memref<1xf32, #tpu.memory_space<smem>>, %arg3: memref<8x128xf32, #tpu.memory_space<vmem>>, %arg4: memref<8x128xf32, #tpu.memory_space<vmem>>) attributes {dimension_semantics = [#tpu.dimension_semantics<parallel>], iteration_bounds = array<i64: 1>, scalar_prefetch = 0 : i64, scratch_operands = 0 : i64, tpu.core_type = #tpu.core_type<tc>, window_params = [{transform_indices = @transform_0, window_bounds = array<i64: 3>}, {transform_indices = @transform_1, window_bounds = array<i64: 1>}, {transform_indices = @transform_2, window_bounds = array<i64: 8, 128>}, {transform_indices = @transform_3, window_bounds = array<i64: 8, 128>}]} {
    %c0 = arith.constant 0 : index
    %c0_0 = arith.constant 0 : index
    %0 = vector.load %arg3[%c0, %c0_0] : memref<8x128xf32, #tpu.memory_space<vmem>>, vector<8x128xf32>
    %c2 = arith.constant 2 : index
    %1 = memref.load %arg1[%c2] : memref<3xf32, #tpu.memory_space<smem>>
    %2 = vector.broadcast %1 : f32 to vector<8x128xf32>
    %3 = arith.mulf %0, %2 : vector<8x128xf32>
    %c1 = arith.constant 1 : index
    %4 = memref.load %arg1[%c1] : memref<3xf32, #tpu.memory_space<smem>>
    %5 = vector.broadcast %4 : f32 to vector<8x128xf32>
    %6 = arith.addf %3, %5 : vector<8x128xf32>
    %7 = arith.mulf %6, %0 : vector<8x128xf32>
    %c0_1 = arith.constant 0 : index
    %8 = memref.load %arg1[%c0_1] : memref<3xf32, #tpu.memory_space<smem>>
    %9 = vector.broadcast %8 : f32 to vector<8x128xf32>
    %10 = arith.addf %7, %9 : vector<8x128xf32>
    %11 = arith.mulf %10, %0 : vector<8x128xf32>
    %c0_2 = arith.constant 0 : index
    %12 = memref.load %arg2[%c0_2] : memref<1xf32, #tpu.memory_space<smem>>
    %13 = vector.broadcast %12 : f32 to vector<8x128xf32>
    %14 = arith.addf %11, %13 : vector<8x128xf32>
    %c0_3 = arith.constant 0 : index
    %c0_4 = arith.constant 0 : index
    %15 = vector.load %arg4[%c0_3, %c0_4] : memref<8x128xf32, #tpu.memory_space<vmem>>, vector<8x128xf32>
    tpu.vector_store %arg4[%c0_3, %c0_4], %14 {strides = array<i32>} : memref<8x128xf32, #tpu.memory_space<vmem>>, vector<8x128xf32>,
    return
  }
  func.func @transform_0(%arg0: i32) -> i32 {
    %c0_i32 = arith.constant 0 : i32
    %c0_i32_0 = arith.constant 0 : i32
    return %c0_i32 : i32
  }
  func.func @transform_1(%arg0: i32) -> i32 {
    %c0_i32 = arith.constant 0 : i32
    %c0_i32_0 = arith.constant 0 : i32
    return %c0_i32 : i32
  }
  func.func @transform_2(%arg0: i32) -> (i32, i32) {
    %c0_i32 = arith.constant 0 : i32
    %c0_i32_0 = arith.constant 0 : i32
    return %arg0, %c0_i32 : i32, i32
  }
  func.func @transform_3(%arg0: i32) -> (i32, i32) {
    %c0_i32 = arith.constant 0 : i32
    %c0_i32_0 = arith.constant 0 : i32
    return %arg0, %c0_i32 : i32, i32
  }
}

</mosaic_0001>

<llo_original>
// kernel: tpu_custom_call.1
$region0: #{tpu_custom_call.1}
  #allocation0 [shape = 'u32[]', space=smem, size = 0x4, offset = 0x4, fixed_abs, tag = 'smem constant byte address 0x4 - core index']
  #allocation1 [shape = 'u32[144,128]{1,0:T(1,128)}', space=vmem, size = 0x12000, scoped, tag = 'internal scratch']
  #allocation2 [shape = 'f32[1]{0:T(128)S(6)}', space=smem, size = 0x200, scoped, tag = 'scoped memory for tpu_custom_call.1']
  %s0 = inlined_call_operand.vmem [shape: f32[3], index: 0, kind: input, shape index: {}]
  %s1 = inlined_call_operand.<no memory space> [shape: f32[1], index: 1, kind: input, shape index: {}]
  %s2 = inlined_call_operand.hbm [shape: f32[8,128], index: 2, kind: input, shape index: {}]
  %s3 = inlined_call_operand.hbm [shape: f32[8,128], index: 3, kind: output, shape index: {}]
  %s4 = sld [smem:[#allocation0]]
  $region30: #{tpu_custom_call.1} parent=0
    _
  %s6 = ssub.s32 1, %s4
  %s7 = scalar_select 0, %s6, %s4
  %8 = sst [smem:[#allocation2]] %s1
  $region1: #{tpu_custom_call.1} parent=0
    #allocation3 [shape = 'u8[512]{0}', space=smem, size = 0x200, scoped, tag = 'input window, operand 0, single buffered']
    #allocation4 [shape = 's32[1]{0}', space=sflag, size = 0x4, scoped, tag = 'scoped memory for tpu_custom_call.1']
    #allocation5 [shape = 's32[1]{0}', space=sflag, size = 0x4, scoped, tag = 'scoped memory for tpu_custom_call.1']
    #allocation6 [shape = 's32[1]{0}', space=sflag, size = 0x4, scoped, tag = 'scoped memory for tpu_custom_call.1']
    #allocation7 [shape = 'u8[4096]{0}', space=vmem, size = 0x1000, scoped, tag = 'input window, operand 2, single buffered']
    #allocation8 [shape = 'u8[4096]{0}', space=vmem, size = 0x1000, scoped, tag = 'output window, operand 0, single buffered']
    %9 = vsyncpa [#allocation6], 0
    %10 = vsyncpa [#allocation4], 0
    %11 = vsyncpa [#allocation5], 0
    // Predicated region
    $region2: #{tpu_custom_call.1} parent=1 // pred_check
      _
    $region3: #{tpu_custom_call.1} parent=1 // pred_check_branch
      %13 = sbr.rel (0) target = $region5
    $region4: #{tpu_custom_call.1} parent=1 // pred_region
      %s15 = ssub.s32 16, 16
      %16 = vsyncadd [#allocation6], %s15
      %s18 = sshll.u32 %s0, 4
      %s19 = int_to_ptr.vmem [resolvable:$true] %s18
      %21 = dma.vmem_to_smem %s19, 16, [#allocation3], [#allocation6]
    $region5: #{tpu_custom_call.1} parent=1 // pred_fallthru
      _
    // Predicated region
    $region6: #{tpu_custom_call.1} parent=1 // pred_check
      _
    $region7: #{tpu_custom_call.1} parent=1 // pred_check_branch
      %23 = sbr.rel (0) target = $region9
    $region8: #{tpu_custom_call.1} parent=1 // pred_region
      _
    $region9: #{tpu_custom_call.1} parent=1 // pred_fallthru
      _
    // Predicated region
    $region10: #{tpu_custom_call.1} parent=1 // pred_check
      _
    $region11: #{tpu_custom_call.1} parent=1 // pred_check_branch
      %25 = sbr.rel (0) target = $region13
    $region12: #{tpu_custom_call.1} parent=1 // pred_region
      %s27 = ssub.s32 128, 128
      %28 = vsyncadd [#allocation4], %s27
      %s30 = sshll.u32 [#allocation7], 4
      %s31 = int_to_ptr.vmem [resolvable:$true] %s30
      %33 = dma.hbm_to_vmem [thread:$0]  %s2, 128, %s31, [#allocation4]
    $region13: #{tpu_custom_call.1} parent=1 // pred_fallthru
      _
    // Predicated region
    $region14: #{tpu_custom_call.1} parent=1 // pred_check
      _
    $region15: #{tpu_custom_call.1} parent=1 // pred_check_branch
      %35 = sbr.rel (0) target = $region17
    $region16: #{tpu_custom_call.1} parent=1 // pred_region
      %36 = dma.done [#allocation6], 16
    $region17: #{tpu_custom_call.1} parent=1 // pred_fallthru
      _
    // Predicated region
    $region18: #{tpu_custom_call.1} parent=1 // pred_check
      _
    $region19: #{tpu_custom_call.1} parent=1 // pred_check_branch
      %38 = sbr.rel (0) target = $region21
    $region20: #{tpu_custom_call.1} parent=1 // pred_region
      %39 = dma.done [#allocation4], 128
    $region21: #{tpu_custom_call.1} parent=1 // pred_fallthru
      _
    %40 = sfence
    %v41 = vld [vmem:[#allocation7] sm:$0xff]
    %s42 = sld [smem:[#allocation3 + $0x2]]
    %v43 = vstv %s42
    %v44 = vmul.f32 %v41, %v43
    %s45 = sld [smem:[#allocation3 + $0x1]]
    %v46 = vstv %s45
    %v47 = vadd.f32 %v44, %v46
    %v48 = vmul.f32 %v47, %v41
    %s49 = sld [smem:[#allocation3]]
    %v50 = vstv %s49
    %v51 = vadd.f32 %v48, %v50
    %v52 = vmul.f32 %v51, %v41
    %s53 = sld [smem:[#allocation2]]
    %v54 = vstv %s53
    %v55 = vadd.f32 %v52, %v54
    %56 = vst [vmem:[#allocation8] sm:$0xff] %v55
    // Predicated region
    $region22: #{tpu_custom_call.1} parent=1 // pred_check
      _
    $region23: #{tpu_custom_call.1} parent=1 // pred_check_branch
      %58 = sbr.rel (0) target = $region25
    $region24: #{tpu_custom_call.1} parent=1 // pred_region
      %s60 = ssub.s32 128, 128
      %61 = vsyncadd [#allocation5], %s60
      %s63 = sshll.u32 [#allocation8], 4
      %s64 = int_to_ptr.vmem [resolvable:$true] %s63
      %66 = dma.vmem_to_hbm [thread:$0]  %s64, 128, %s3, [#allocation5]
    $region25: #{tpu_custom_call.1} parent=1 // pred_fallthru
      _
    // Predicated region
    $region26: #{tpu_custom_call.1} parent=1 // pred_check
      _
    $region27: #{tpu_custom_call.1} parent=1 // pred_check_branch
      %68 = sbr.rel (0) target = $region29
    $region28: #{tpu_custom_call.1} parent=1 // pred_region
      %69 = dma.done [#allocation5], 128
    $region29: #{tpu_custom_call.1} parent=1 // pred_fallthru
      _
    %70 = vsyncpa [#allocation4], 1
    %71 = vsyncpa [#allocation5], 1
    %72 = vsyncpa [#allocation6], 1

</llo_original>
